<compile_context>
chip_gen: v6e
topology: v6e:2x2x1
jax: 0.10.0
libtpu: 0.0.40
codegen_flags: <defaults>
</compile_context>

<pallas_src>
import functools

import jax
import jax.numpy as jnp
from jax.experimental import pallas as pl
from jax.experimental.pallas import tpu as pltpu

LRELU_SLOPE = 0.1
HALO = 7          # 2 + 2 + 2 + 1 frames of left/right context for the conv stack


def _conv_valid(h, w_ref, b_ref, cdt):
    """VALID cross-correlation on an assembled window (channel-major).

    h     : (Cin, Win)      f32 activations
    w_ref : (K, Cout, Cin)  weights (cast to compute dtype)
    b_ref : (Cout, 1)       f32 bias
    returns (Cout, Win - K + 1) f32
    """
    K = w_ref.shape[0]
    w_out = h.shape[-1] - (K - 1)
    hc = h.astype(cdt)
    acc = jnp.dot(w_ref[0].astype(cdt), hc[:, 0:w_out],
                  preferred_element_type=jnp.float32)
    for k in range(1, K):
        acc = acc + jnp.dot(w_ref[k].astype(cdt), hc[:, k:k + w_out],
                            preferred_element_type=jnp.float32)
    return acc + b_ref[...].astype(jnp.float32)


# ---------------------------- pass 1: pre (1x1 conv) -------------------------
def _pre_kernel(cdt, x_ref, w_ref, b_ref, o_ref):
    x = x_ref[0].astype(cdt)                       # (Cin, t_tile)
    w = w_ref[0].astype(cdt)                       # (C0,  Cin)
    y = jnp.dot(w, x, preferred_element_type=jnp.float32)
    o_ref[0, :, :] = (y + b_ref[...].astype(jnp.float32)).astype(o_ref.dtype)


# --------------------- pass 2: conv stack + conv_post ------------------------
def _stack_kernel(t_tile, t_valid, cdt,
                  hp_ref, hc_ref, hn_ref,
                  w1_ref, b1_ref, w2_ref, b2_ref, w3_ref, b3_ref,
                  wq_ref, bq_ref, out_ref):
    t = pl.program_id(1)
    g0 = t * t_tile - HALO          # global time index of window column 0

    # Assemble the (C0, t_tile + 2*HALO) channel-major window from the
    # previous / current / next T-tiles of the pre output (lane-axis concat,
    # stays in VMEM).
    h = jnp.concatenate(
        [hp_ref[0, :, t_tile - HALO:],      # left halo  (prev tile tail)
         hc_ref[0],                         # current tile
         hn_ref[0, :, :HALO]],              # right halo (next tile head)
        axis=1).astype(jnp.float32)

    def mask_oob(a, off):
        # Zero columns whose global position lies outside [0, t_valid): this is
        # exactly the zero padding each 'same' conv applies to its own input,
        # and it neutralizes the clamped halo content at sequence ends and the
        # trailing T-padding.
        g = (g0 + off) + jax.lax.broadcasted_iota(jnp.int32, (1, a.shape[-1]), 1)
        return jnp.where(jnp.logical_and(g >= 0, g < t_valid), a, 0.0)

    h = mask_oob(h, 0)

    # three k=5 'same' convs + leaky relu; window shrinks by 4 per layer
    off = 0
    for w_ref, b_ref in ((w1_ref, b1_ref), (w2_ref, b2_ref), (w3_ref, b3_ref)):
        off += 2
        h = _conv_valid(h, w_ref, b_ref, cdt)
        h = jnp.where(h > 0, h, LRELU_SLOPE * h)
        h = mask_oob(h, off)

    # conv_post: k=3, Cout=1 -> lane-dense (1, t_tile) row
    y = _conv_valid(h, wq_ref, bq_ref, cdt)
    out_ref[0, 0, :, :] = y.reshape(out_ref.shape[2],
                                    out_ref.shape[3]).astype(out_ref.dtype)


def wavlm_discriminator(x, params, *, t_tile=128, compute_dtype=jnp.float32):
    """x: (B, slm_hidden*slm_layers, T) float32 in PyTorch NCW layout.
    params: 5 (weight, bias) pairs in kernel layout:
            weight (K, Cout, Cin), bias (Cout, 1) for [pre, conv1..3, conv_post].
    Returns (B, T) float32 == torch.flatten(conv_post_out, 1, -1)."""
    assert t_tile % 128 == 0, "t_tile must be a multiple of the 128-lane width"
    B, c_in, T = x.shape
    n_t = pl.cdiv(T, t_tile)
    t_pad = n_t * t_tile
    if t_pad != T:
        x = jnp.pad(x, ((0, 0), (0, 0), (0, t_pad - T)))

    # Matmul weights in the compute dtype; biases stay f32 (f32 accumulation).
    params_c = [(w.astype(compute_dtype), b.astype(jnp.float32))
                for (w, b) in params]
    (wp, bp) = params_c[0]
    conv_params = params_c[1:]
    c0 = wp.shape[1]                      # initial_channel
    wbytes = wp.dtype.itemsize

    # -------- pass 1: pre 1x1 conv, x (B, Cin, T) -> pre (B, C0, T) ----------
    est1 = 2 * c_in * t_tile * 4 + c_in * c0 * wbytes + 2 * c0 * t_tile * 4
    vmem1 = int(min(max(2 * est1, 32 * 1024 * 1024), 64 * 1024 * 1024))
    pre = pl.pallas_call(
        functools.partial(_pre_kernel, compute_dtype),
        out_shape=jax.ShapeDtypeStruct((B, c0, t_pad), jnp.float32),
        grid=(B, n_t),
        in_specs=[pl.BlockSpec((1, c_in, t_tile), lambda b, t: (b, 0, t)),
                  pl.BlockSpec(wp.shape, lambda b, t: (0, 0, 0)),
                  pl.BlockSpec(bp.shape, lambda b, t: (0, 0))],
        out_specs=pl.BlockSpec((1, c0, t_tile), lambda b, t: (b, 0, t)),
        compiler_params=pltpu.CompilerParams(
            dimension_semantics=("parallel", "parallel"),
            vmem_limit_bytes=vmem1),
    )(x, wp, bp)

    # -------- pass 2: conv stack on the small (B, C0, T) tensor --------------
    m = t_tile // 128
    last_t = n_t - 1
    in_specs = [
        # prev / cur / next T-tile of the pre output: three views of the same
        # HBM array.  Clamped indices at sequence ends are neutralized by
        # mask_oob in the kernel.
        pl.BlockSpec((1, c0, t_tile),
                     lambda b, t: (b, 0, jnp.maximum(t - 1, 0))),
        pl.BlockSpec((1, c0, t_tile), lambda b, t: (b, 0, t)),
        pl.BlockSpec((1, c0, t_tile),
                     lambda b, t, _last=last_t: (b, 0, jnp.minimum(t + 1, _last))),
    ]
    flat_args = [pre, pre, pre]
    for (w, bias) in conv_params:
        flat_args += [w, bias]
        in_specs += [
            pl.BlockSpec(w.shape, lambda b, t, _n=w.ndim: (0,) * _n),
            pl.BlockSpec(bias.shape, lambda b, t: (0, 0)),
        ]

    w0 = t_tile + 2 * HALO
    act_bytes = 12 * c0 * w0 * 4                      # live activations (f32)
    in_bytes = 3 * 2 * c0 * t_tile * 4                # 3 views, double-buffered
    wgt_bytes = sum(w.size * w.dtype.itemsize + bias.size * 4
                    for (w, bias) in conv_params)
    est2 = act_bytes + in_bytes + wgt_bytes + 2 * m * 128 * 4
    vmem2 = int(min(max(4 * est2, 32 * 1024 * 1024), 64 * 1024 * 1024))

    kernel = functools.partial(_stack_kernel, t_tile, T, compute_dtype)
    out = pl.pallas_call(
        kernel,
        out_shape=jax.ShapeDtypeStruct((B, n_t, m, 128), jnp.float32),
        grid=(B, n_t),
        in_specs=in_specs,
        out_specs=pl.BlockSpec((1, 1, m, 128), lambda b, t: (b, t, 0, 0)),
        compiler_params=pltpu.CompilerParams(
            dimension_semantics=("parallel", "parallel"),
            vmem_limit_bytes=vmem2),
    )(*flat_args)

    return out.reshape(B, t_pad)[:, :T]


# ---------------- parameter construction (deterministic, synthetic) ----------
def make_params(key, slm_hidden, slm_layers, initial_channel):
    """weight_norm/spectral_norm are reparametrizations of the same effective
    Conv1d weight, so the forward pass only needs the effective weights."""
    C = initial_channel
    torch_shapes = [
        (C, slm_hidden * slm_layers, 1),      # pre
        (2 * C, C, 5),                        # convs[0]
        (4 * C, 2 * C, 5),                    # convs[1]
        (4 * C, 4 * C, 5),                    # convs[2]
        (1, 4 * C, 3),                        # conv_post
    ]
    kern_params, torch_params = [], []
    for (co, ci, k) in torch_shapes:
        key, kw, kb = jax.random.split(key, 3)
        w = 0.1 * jax.random.normal(kw, (co, ci, k), jnp.float32)
        b = 0.1 * jax.random.normal(kb, (co,), jnp.float32)
        torch_params.append((w, b))
        # kernel layout: (K, Cout, Cin) weights, (Cout, 1) bias column
        kern_params.append((jnp.transpose(w, (2, 0, 1)), b[:, None]))
    return kern_params, torch_params


# ---------------- pure-JAX reference (mirrors the torch forward) -------------
def reference_forward(x, torch_params):
    def conv1d(x, w, b, pad):
        y = jax.lax.conv_general_dilated(
            x, w, window_strides=(1,), padding=[(pad, pad)],
            dimension_numbers=("NCH", "OIH", "NCH"),
            precision=jax.lax.Precision.HIGHEST)
        return y + b[None, :, None]

    (wp, bp), (w1, b1), (w2, b2), (w3, b3), (wq, bq) = torch_params
    h = conv1d(x, wp, bp, 0)
    for (w, b) in ((w1, b1), (w2, b2), (w3, b3)):
        h = conv1d(h, w, b, 2)
        h = jnp.where(h > 0, h, LRELU_SLOPE * h)
    h = conv1d(h, wq, bq, 1)
    return h.reshape(h.shape[0], -1)


if __name__ == "__main__":
    # Small config consistent with the module structure
    # (real defaults: slm_hidden=768, slm_layers=13, initial_channel=64).
    slm_hidden, slm_layers, initial_channel = 32, 2, 16
    B, T, t_tile = 2, 320, 128                     # 3 time tiles, last one partial
    c_in = slm_hidden * slm_layers                 # 64

    key = jax.random.PRNGKey(0)
    key, kx = jax.random.split(key)
    x = jax.random.normal(kx, (B, c_in, T), jnp.float32)
    kern_params, torch_params = make_params(key, slm_hidden, slm_layers,
                                            initial_channel)

    ref = reference_forward(x, torch_params)

    # f32 path: matches the reference up to accumulation order.
    out = jax.block_until_ready(
        wavlm_discriminator(x, kern_params, t_tile=t_tile,
                            compute_dtype=jnp.float32))
    assert out.shape == (B, T), out.shape
    assert jnp.allclose(out, ref, rtol=2e-3, atol=2e-3), \
        float(jnp.max(jnp.abs(out - ref)))

    # bf16 MXU path (f32 accumulation): loose sanity check only.
    out_bf16 = jax.block_until_ready(
        wavlm_discriminator(x, kern_params, t_tile=t_tile,
                            compute_dtype=jnp.bfloat16))
    assert jnp.allclose(out_bf16, ref, rtol=2e-1, atol=2e-1), \
        float(jnp.max(jnp.abs(out_bf16 - ref)))

    print("KERNEL_OK")
</pallas_src>

<mosaic_0001>
module attributes {stable_mosaic.version = 11 : i64} {
  func.func @_pre_kernel(%arg0: i32, %arg1: i32, %arg2: memref<1x64x128xf32, #tpu.memory_space<vmem>>, %arg3: memref<1x16x64xf32, #tpu.memory_space<vmem>>, %arg4: memref<16x1xf32, #tpu.memory_space<vmem>>, %arg5: memref<1x16x128xf32, #tpu.memory_space<vmem>>) attributes {dimension_semantics = [#tpu.dimension_semantics<parallel>, #tpu.dimension_semantics<parallel>], iteration_bounds = array<i64: 2, 3>, scalar_prefetch = 0 : i64, scratch_operands = 0 : i64, tpu.core_type = #tpu.core_type<tc>, window_params = [{transform_indices = @transform_0, window_bounds = array<i64: 1, 64, 128>}, {pipeline_mode = #tpu.pipeline_mode<synchronous>, transform_indices = @transform_1, window_bounds = array<i64: 1, 16, 64>}, {pipeline_mode = #tpu.pipeline_mode<synchronous>, transform_indices = @transform_2, window_bounds = array<i64: 16, 1>}, {transform_indices = @transform_3, window_bounds = array<i64: 1, 16, 128>}]} {
    %c0 = arith.constant 0 : index
    %c0_0 = arith.constant 0 : index
    %c0_1 = arith.constant 0 : index
    %0 = vector.load %arg2[%c0, %c0_0, %c0_1] : memref<1x64x128xf32, #tpu.memory_space<vmem>>, vector<1x64x128xf32>
    %1 = vector.shape_cast %0 : vector<1x64x128xf32> to vector<64x128xf32>
    %c0_2 = arith.constant 0 : index
    %c0_3 = arith.constant 0 : index
    %c0_4 = arith.constant 0 : index
    %2 = vector.load %arg3[%c0_2, %c0_3, %c0_4] : memref<1x16x64xf32, #tpu.memory_space<vmem>>, vector<1x16x64xf32>
    %3 = vector.shape_cast %2 : vector<1x16x64xf32> to vector<16x64xf32>
    %cst = arith.constant dense<0.000000e+00> : vector<16x128xf32>
    %4 = tpu.matmul %3, %1, %cst {dimension_numbers = #tpu.dot_dimension_numbers<[1], [0], [0], [1], [0, 0, 1, 1], [], []>} : vector<16x64xf32>, vector<64x128xf32>, vector<16x128xf32> -> vector<16x128xf32>
    %c0_5 = arith.constant 0 : index
    %c0_6 = arith.constant 0 : index
    %5 = vector.load %arg4[%c0_5, %c0_6] : memref<16x1xf32, #tpu.memory_space<vmem>>, vector<16x1xf32>
    %6 = vector.broadcast %5 : vector<16x1xf32> to vector<16x128xf32>
    %7 = arith.addf %4, %6 : vector<16x128xf32>
    %c0_7 = arith.constant 0 : index
    %c0_8 = arith.constant 0 : index
    %c0_9 = arith.constant 0 : index
    %8 = vector.load %arg5[%c0_7, %c0_8, %c0_9] : memref<1x16x128xf32, #tpu.memory_space<vmem>>, vector<1x16x128xf32>
    %9 = vector.shape_cast %8 : vector<1x16x128xf32> to vector<16x128xf32>
    %10 = vector.shape_cast %7 : vector<16x128xf32> to vector<1x16x128xf32>
    tpu.vector_store %arg5[%c0_7, %c0_8, %c0_9], %10 {strides = array<i32>} : memref<1x16x128xf32, #tpu.memory_space<vmem>>, vector<1x16x128xf32>,
    return
  }
  func.func @transform_0(%arg0: i32, %arg1: i32) -> (i32, i32, i32) {
    %c0_i32 = arith.constant 0 : i32
    %c0_i32_0 = arith.constant 0 : i32
    return %arg0, %c0_i32, %arg1 : i32, i32, i32
  }
  func.func @transform_1(%arg0: i32, %arg1: i32) -> (i32, i32, i32) {
    %c0_i32 = arith.constant 0 : i32
    %c0_i32_0 = arith.constant 0 : i32
    %c0_i32_1 = arith.constant 0 : i32
    %c0_i32_2 = arith.constant 0 : i32
    return %c0_i32, %c0_i32_0, %c0_i32_1 : i32, i32, i32
  }
  func.func @transform_2(%arg0: i32, %arg1: i32) -> (i32, i32) {
    %c0_i32 = arith.constant 0 : i32
    %c0_i32_0 = arith.constant 0 : i32
    %c0_i32_1 = arith.constant 0 : i32
    return %c0_i32, %c0_i32_0 : i32, i32
  }
  func.func @transform_3(%arg0: i32, %arg1: i32) -> (i32, i32, i32) {
    %c0_i32 = arith.constant 0 : i32
    %c0_i32_0 = arith.constant 0 : i32
    return %arg0, %c0_i32, %arg1 : i32, i32, i32
  }
}

</mosaic_0001>

<llo_original>
// kernel: tpu_custom_call.1
$region0: #{tpu_custom_call.1}
  #allocation0 [shape = 'u32[]', space=smem, size = 0x4, offset = 0x4, fixed_abs, tag = 'smem constant byte address 0x4 - core index']
  #allocation1 [shape = 'u32[144,128]{1,0:T(1,128)}', space=vmem, size = 0x12000, scoped, tag = 'internal scratch']
  %s0 = inlined_call_operand.hbm [shape: f32[2,64,384], index: 0, kind: input, shape index: {}]
  %s1 = inlined_call_operand.vmem [shape: f32[1,16,64], index: 1, kind: input, shape index: {}]
  %s2 = inlined_call_operand.vmem [shape: f32[16,1], index: 2, kind: input, shape index: {}]
  %s3 = inlined_call_operand.hbm [shape: f32[2,16,384], index: 3, kind: output, shape index: {}]
  %s4 = sld [smem:[#allocation0]]
  $region49: #{tpu_custom_call.1} parent=0
    _
  %s6 = ssub.s32 1, %s4
  %s7 = scalar_select 0, %s6, %s4
  $region1: #{tpu_custom_call.1} parent=0
    #allocation2 [shape = 'u8[65536]{0}', space=vmem, size = 0x10000, scoped, tag = 'input window, operand 0']
    #allocation3 [shape = 's32[2]{0}', space=sflag, size = 0x8, scoped, tag = 'scoped memory for tpu_custom_call.1']
    #allocation4 [shape = 's32[2]{0}', space=sflag, size = 0x8, scoped, tag = 'scoped memory for tpu_custom_call.1']
    #allocation5 [shape = 'u8[16384]{0}', space=vmem, size = 0x4000, scoped, tag = 'output window, operand 0']
    %8 = vsyncpa [#allocation3], 0
    %s9 = scalar_lea.sflag [#allocation3], 1
    %10 = vsyncpa %s9, 0
    %11 = vsyncpa [#allocation4], 0
    %s12 = scalar_lea.sflag [#allocation4], 1
    %13 = vsyncpa %s12, 0
    loop: start=0, step=1, limit=8
    $region2: #{tpu_custom_call.1} parent=1 // loop_pre_header
      _
    $region3: #{tpu_custom_call.1} parent=1 // loop_header
      %s15 = sphi 0, %s19
      %p16 = scmp.ge.s32.totalorder %s15, 8
      %s22 = sphi 0, %s34
      %s23 = sphi 0, %s30
      %s24 = sphi 0, %s22
      %s25 = sphi 0, %s23
      %s26 = sphi 0, %s24
      %s27 = sphi 0, %s25
      %s39 = sphi 0, %s41
      %s42 = sphi 0, %s39
      %s43 = sphi 0, %s42
      %s59 = sphi 0, %s43
      %s63 = sphi 0, %s63
      %s65 = sphi 0, %s63
      %s66 = sphi 0, %s65
      %s80 = sphi 0, %s66
      %s84 = sphi 0, %s84
      %s86 = sphi 0, %s84
      %s87 = sphi 0, %s86
      %s101 = sphi 0, %s87
      %s109 = sphi 0, %s111
      %s112 = sphi 0, %s109
      %s113 = sphi 0, %s112
      %s129 = sphi 0, %s113
    $region4: #{tpu_custom_call.1} parent=1 // loop_header_branch
      %18 = sbr.rel (%p16) target = $region8
    $region5: #{tpu_custom_call.1} parent=1 // loop_body
      %s20 = ssub.s32 %s15, 1
      %s21 = ssub.s32 %s15, 2
      %s28 = sadd.s32 1, %s23
      %p29 = scmp.ge.s32.totalorder %s28, 3
      %s30 = scalar_select %p29, 0, %s28
      %s31 = sadd.s32 1, %s22
      %s32 = scalar_select %p29, %s31, %s22
      %p33 = scmp.ge.s32.totalorder %s32, 2
      %s34 = scalar_select %p33, 0, %s32
      %s35 = ssub.s32 %s22, %s34
      %s36 = ssub.s32 %s23, %s30
      %s37 = sor.u32 %s35, %s36
      %p38 = scmp.eq.s32.totalorder %s37, 0
      %s40 = sadd.s32 %s39, 1
      %s41 = scalar_select %p38, %s39, %s40
      %p44 = pneg %p38
      %p45 = scmp.eq.s32.totalorder %s15, 5
      %p46 = por %p44, %p45
      %p47 = scmp.ne.s32.totalorder %s39, %s42
      %p48 = scmp.eq.s32.totalorder %s15, 0
      %p49 = por %p47, %p48
      %p50 = scmp.ne.s32.totalorder %s39, %s42
      %p51 = scmp.eq.s32.totalorder %s20, 5
      %p52 = por %p50, %p51
      %p53 = scmp.ne.s32.totalorder %s42, %s43
      %p54 = scmp.eq.s32.totalorder %s20, 0
      %p55 = por %p53, %p54
      %p56 = scmp.ne.s32.totalorder %s42, %s43
      %p57 = scmp.eq.s32.totalorder %s21, 5
      %p58 = por %p56, %p57
      %p60 = scmp.ne.s32.totalorder %s43, %s59
      %p61 = scmp.eq.s32.totalorder %s21, 0
      %p62 = por %p60, %p61
      %s64 = sadd.s32 %s63, 1
      %p67 = scmp.eq.s32.totalorder %s15, 5
      %p68 = scmp.ne.s32.totalorder %s63, %s65
      %p69 = scmp.eq.s32.totalorder %s15, 0
      %p70 = por %p68, %p69
      %p71 = scmp.ne.s32.totalorder %s63, %s65
      %p72 = scmp.eq.s32.totalorder %s20, 5
      %p73 = por %p71, %p72
      %p74 = scmp.ne.s32.totalorder %s65, %s66
      %p75 = scmp.eq.s32.totalorder %s20, 0
      %p76 = por %p74, %p75
      %p77 = scmp.ne.s32.totalorder %s65, %s66
      %p78 = scmp.eq.s32.totalorder %s21, 5
      %p79 = por %p77, %p78
      %p81 = scmp.ne.s32.totalorder %s66, %s80
      %p82 = scmp.eq.s32.totalorder %s21, 0
      %p83 = por %p81, %p82
      %s85 = sadd.s32 %s84, 1
      %p88 = scmp.eq.s32.totalorder %s15, 5
      %p89 = scmp.ne.s32.totalorder %s84, %s86
      %p90 = scmp.eq.s32.totalorder %s15, 0
      %p91 = por %p89, %p90
      %p92 = scmp.ne.s32.totalorder %s84, %s86
      %p93 = scmp.eq.s32.totalorder %s20, 5
      %p94 = por %p92, %p93
      %p95 = scmp.ne.s32.totalorder %s86, %s87
      %p96 = scmp.eq.s32.totalorder %s20, 0
      %p97 = por %p95, %p96
      %p98 = scmp.ne.s32.totalorder %s86, %s87
      %p99 = scmp.eq.s32.totalorder %s21, 5
      %p100 = por %p98, %p99
      %p102 = scmp.ne.s32.totalorder %s87, %s101
      %p103 = scmp.eq.s32.totalorder %s21, 0
      %p104 = por %p102, %p103
      %s105 = ssub.s32 %s22, %s34
      %s106 = ssub.s32 %s23, %s30
      %s107 = sor.u32 %s105, %s106
      %p108 = scmp.eq.s32.totalorder %s107, 0
      %s110 = sadd.s32 %s109, 1
      %s111 = scalar_select %p108, %s109, %s110
      %p114 = pneg %p108
      %p115 = scmp.eq.s32.totalorder %s15, 5
      %p116 = por %p114, %p115
      %p117 = scmp.ne.s32.totalorder %s109, %s112
      %p118 = scmp.eq.s32.totalorder %s15, 0
      %p119 = por %p117, %p118
      %p120 = scmp.ne.s32.totalorder %s109, %s112
      %p121 = scmp.eq.s32.totalorder %s20, 5
      %p122 = por %p120, %p121
      %p123 = scmp.ne.s32.totalorder %s112, %s113
      %p124 = scmp.eq.s32.totalorder %s20, 0
      %p125 = por %p123, %p124
      %p126 = scmp.ne.s32.totalorder %s112, %s113
      %p127 = scmp.eq.s32.totalorder %s21, 5
      %p128 = por %p126, %p127
      %p130 = scmp.ne.s32.totalorder %s113, %s129
      %p131 = scmp.eq.s32.totalorder %s21, 0
      %p132 = por %p130, %p131
      %p133 = scmp.le.s32.totalorder 1, %s15
      %p134 = scmp.lt.s32.totalorder %s15, 7
      %p135 = pnand %p133, %p134
      %p136 = pneg %p135
      // Predicated region
      $region9: #{tpu_custom_call.1} parent=5 // pred_check
        _
      $region10: #{tpu_custom_call.1} parent=5 // pred_check_branch
        %138 = sbr.rel (%p135) target = $region12
      $region11: #{tpu_custom_call.1} parent=5 // pred_region
        %s139 = ssub.s32 %s15, 1
        // Predicated region
        $region13: #{tpu_custom_call.1} parent=11 // pred_check
          %p140 = pneg %p76
        $region14: #{tpu_custom_call.1} parent=11 // pred_check_branch
          %142 = sbr.rel (%p140) target = $region16
        $region15: #{tpu_custom_call.1} parent=11 // pred_region
          _
        $region16: #{tpu_custom_call.1} parent=11 // pred_fallthru
          _
        // Predicated region
        $region17: #{tpu_custom_call.1} parent=11 // pred_check
          %p143 = pneg %p97
        $region18: #{tpu_custom_call.1} parent=11 // pred_check_branch
          %145 = sbr.rel (%p143) target = $region20
        $region19: #{tpu_custom_call.1} parent=11 // pred_region
          _
        $region20: #{tpu_custom_call.1} parent=11 // pred_fallthru
          _
      $region12: #{tpu_custom_call.1} parent=5 // pred_fallthru
        _
      %p146 = scmp.lt.s32.totalorder %s15, 6
      // Predicated region
      $region21: #{tpu_custom_call.1} parent=5 // pred_check
        %p147 = pneg %p146
      $region22: #{tpu_custom_call.1} parent=5 // pred_check_branch
        %149 = sbr.rel (%p147) target = $region24
      $region23: #{tpu_custom_call.1} parent=5 // pred_region
        // Predicated region
        $region25: #{tpu_custom_call.1} parent=23 // pred_check
          %p150 = pneg %p49
        $region26: #{tpu_custom_call.1} parent=23 // pred_check_branch
          %152 = sbr.rel (%p150) target = $region28
        $region27: #{tpu_custom_call.1} parent=23 // pred_region
          %s153 = sand.u32 %s39, 1
          %s154 = scalar_lea.sflag [#allocation3], %s153
          %s155 = sand.u32 %s39, 1
          %s156 = smul.addr %s155, 64
          %s157 = scalar_lea.vmem [#allocation2], %s156
          %s159 = ssub.s32 1024, 1024
          %160 = vsyncadd %s154, %s159
          %s161 = smul.addr %s22, 24
          %s162 = sadd.s32 %s23, %s161
          %s163 = smul.addr %s162, 128
          %s164 = scalar_lea.hbm %s0, %s163
          %s165 = sshll.u32 %s157, 4
          %s166 = int_to_ptr.vmem [resolvable:$true] %s165
          %171 = dma.hbm_to_vmem [thread:$0]  %s164, 1024, %s166, %s154, 384, 128, 8
        $region28: #{tpu_custom_call.1} parent=23 // pred_fallthru
          _
      $region24: #{tpu_custom_call.1} parent=5 // pred_fallthru
        _
      %p172 = scmp.le.s32.totalorder 1, %s15
      %p173 = scmp.lt.s32.totalorder %s15, 7
      %p174 = pnand %p172, %p173
      %p175 = pneg %p174
      // Predicated region
      $region29: #{tpu_custom_call.1} parent=5 // pred_check
        _
      $region30: #{tpu_custom_call.1} parent=5 // pred_check_branch
        %177 = sbr.rel (%p174) target = $region32
      $region31: #{tpu_custom_call.1} parent=5 // pred_region
        %s178 = ssub.s32 %s15, 1
        %s179 = sand.u32 %s42, 1
        %s180 = scalar_lea.sflag [#allocation3], %s179
        %s181 = sand.u32 %s42, 1
        %s182 = smul.addr %s181, 64
        %s183 = scalar_lea.vmem [#allocation2], %s182
        // Predicated region
        $region33: #{tpu_custom_call.1} parent=31 // pred_check
          %p184 = pneg %p55
        $region34: #{tpu_custom_call.1} parent=31 // pred_check_branch
          %186 = sbr.rel (%p184) target = $region36
        $region35: #{tpu_custom_call.1} parent=31 // pred_region
          %187 = dma.done %s180, 1024
        $region36: #{tpu_custom_call.1} parent=31 // pred_fallthru
          _
        %s188 = sand.u32 %s42, 1
        %s189 = scalar_lea.sflag [#allocation3], %s188
        %s190 = sand.u32 %s42, 1
        %s191 = smul.addr %s190, 64
        %s192 = scalar_lea.vmem [#allocation2], %s191
        %p193 = pneg %p55
        %p194 = pneg %p52
        %p195 = pneg %p76
        %p196 = pneg %p73
        %p197 = pneg %p97
        %p198 = pneg %p94
        %p199 = pneg %p125
        %p200 = pneg %p122
        %s201 = sand.u32 %s112, 1
        %s202 = scalar_lea.sflag [#allocation4], %s201
        %s203 = sand.u32 %s112, 1
        %s204 = smul.addr %s203, 16
        %s205 = scalar_lea.vmem [#allocation5], %s204
        %v206 = vld [vmem:[%s183] sm:$0xff]
        %v207 = vld [vmem:[%s183 + $0x8] sm:$0xff]
        %v208 = vld [vmem:[%s183 + $0x10] sm:$0xff]
        %v209 = vld [vmem:[%s183 + $0x18] sm:$0xff]
        %v210 = vld [vmem:[%s183 + $0x20] sm:$0xff]
        %v211 = vld [vmem:[%s183 + $0x28] sm:$0xff]
        %v212 = vld [vmem:[%s183 + $0x30] sm:$0xff]
        %v213 = vld [vmem:[%s183 + $0x38] sm:$0xff]
        %v214 = vld [vmem:[%s1] sm:$0xff]
        %v215 = vld [vmem:[%s1 + $0x8] sm:$0xff]
        %v216 = vld [vmem:[%s2] sm:$0xff]
        %v217 = vld [vmem:[%s2 + $0x8] sm:$0xff]
        %219 = vset.pattern.permute.xlu0 0
        %220 = vperm.xlu0 %219, %v216
        %v221 = vpop.permute.xlu0 %220
        %224 = vset.pattern.permute.xlu0 0
        %225 = vperm.xlu0 %224, %v217
        %v226 = vpop.permute.xlu0 %225
        %vm228 = vcmask 523264
        %v230 = vsel %vm228, %v214, 0
        %v233 = vsel %vm228, %v215, 0
        %235 = vmatprep.subr.mxu0 0.0
        %236 = vmatpush1.msra.mxu0 0.0
        %237 = vmatprep.subr.mxu0 0.0
        %238 = vmatpush1.msra.mxu0 0.0
        %239 = vmatprep.subr.mxu0 0.0
        %240 = vmatpush1.msra.mxu0 0.0
        %241 = vmatprep.subr.mxu0 0.0
        %242 = vmatpush1.msra.mxu0 0.0
        %243 = vmatprep.subr.mxu0 0.0
        %244 = vmatpush1.msra.mxu0 0.0
        %245 = vmatprep.subr.mxu0 0.0
        %246 = vmatpush1.msra.mxu0 0.0
        %247 = vmatprep.subr.mxu0 0.0
        %248 = vmatpush1.msra.mxu0 0.0
        %249 = vmatprep.subr.mxu0 0.0
        %250 = vmatpush1.msra.mxu0 0.0
        %251 = vmatprep.subr.mxu0 0.0
        %252 = vmatpush1.msra.mxu0 %v213
        %253 = vmatprep.subr.mxu0 0.0
        %254 = vmatpush1.msra.mxu0 %v212
        %255 = vmatprep.subr.mxu0 0.0
        %256 = vmatpush1.msra.mxu0 %v211
        %257 = vmatprep.subr.mxu0 0.0
        %258 = vmatpush1.msra.mxu0 %v210
        %259 = vmatprep.subr.mxu0 0.0
        %260 = vmatpush1.msra.mxu0 %v209
        %261 = vmatprep.subr.mxu0 0.0
        %262 = vmatpush1.msra.mxu0 %v208
        %263 = vmatprep.subr.mxu0 0.0
        %264 = vmatpush1.msra.mxu0 %v207
        %265 = vmatprep.subr.mxu0 0.0
        %266 = vmatpush1.msra.mxu0 %v206
        %267 = vmatprep.subr.mxu0 0.0
        %268 = vmatpush2.msra.mxu0 0.0
        %269 = vmatprep.subr.mxu0 0.0
        %270 = vmatpush2.msra.mxu0 0.0
        %271 = vmatprep.subr.mxu0 0.0
        %272 = vmatpush2.msra.mxu0 0.0
        %273 = vmatprep.subr.mxu0 0.0
        %274 = vmatpush2.msra.mxu0 0.0
        %275 = vmatprep.subr.mxu0 0.0
        %276 = vmatpush2.msra.mxu0 0.0
        %277 = vmatprep.subr.mxu0 0.0
        %278 = vmatpush2.msra.mxu0 0.0
        %279 = vmatprep.subr.mxu0 0.0
        %280 = vmatpush2.msra.mxu0 0.0
        %281 = vmatprep.subr.mxu0 0.0
        %282 = vmatpush2.msra.mxu0 0.0
        %283 = vmatprep.subr.mxu0 0.0
        %284 = vmatpush2.msra.mxu0 0.0
        %285 = vmatprep.subr.mxu0 0.0
        %286 = vmatpush2.msra.mxu0 0.0
        %287 = vmatprep.subr.mxu0 0.0
        %288 = vmatpush2.msra.mxu0 0.0
        %289 = vmatprep.subr.mxu0 0.0
        %290 = vmatpush2.msra.mxu0 0.0
        %291 = vmatprep.subr.mxu0 0.0
        %292 = vmatpush2.msra.mxu0 0.0
        %293 = vmatprep.subr.mxu0 0.0
        %294 = vmatpush2.msra.mxu0 0.0
        %295 = vmatprep.subr.mxu0 0.0
        %296 = vmatpush2.msra.mxu0 0.0
        %297 = vmatprep.subr.mxu0 0.0
        %298 = vmatpush2.msra.mxu0 0.0
        %299 = vmatprep.mubr.f32.mxu0 0.0
        %300 = vmatmul.mubr.f32.gmra.mxu0 %v230
        %v301 = vpop.f32.mrf.mxu0
        %v302 = vadd.f32 %v221, %v301
        %v303 = vpop.f32.mrf.mxu0
        %304 = vmatprep.mubr.f32.mxu0 0.0
        %305 = vmatmul.mubr.f32.gmra.mxu0 %v233
        %v306 = vpop.f32.mrf.mxu0
        %v307 = vadd.f32 %v226, %v306
        %v308 = vpop.f32.mrf.mxu0
        %309 = vdwg.mxu0
        %310 = vst [vmem:[%s205] sm:$0xff] %v302
        %311 = vst [vmem:[%s205 + $0x8] sm:$0xff] %v307
        %s312 = sand.u32 %s112, 1
        %s313 = scalar_lea.sflag [#allocation4], %s312
        %s314 = sand.u32 %s112, 1
        %s315 = smul.addr %s314, 16
        %s316 = scalar_lea.vmem [#allocation5], %s315
        // Predicated region
        $region37: #{tpu_custom_call.1} parent=31 // pred_check
          %p317 = pneg %p122
        $region38: #{tpu_custom_call.1} parent=31 // pred_check_branch
          %319 = sbr.rel (%p317) target = $region40
        $region39: #{tpu_custom_call.1} parent=31 // pred_region
          %s321 = ssub.s32 256, 256
          %322 = vsyncadd %s313, %s321
          %s323 = smul.addr %s24, 6
          %s324 = sadd.s32 %s25, %s323
          %s325 = smul.addr %s324, 128
          %s326 = scalar_lea.hbm %s3, %s325
          %s327 = sshll.u32 %s316, 4
          %s328 = int_to_ptr.vmem [resolvable:$true] %s327
          %333 = dma.vmem_to_hbm [thread:$0]  %s328, 256, %s326, %s313, 128, 384, 8
        $region40: #{tpu_custom_call.1} parent=31 // pred_fallthru
          _
      $region32: #{tpu_custom_call.1} parent=5 // pred_fallthru
        _
      %p334 = scmp.le.s32.totalorder 2, %s15
      // Predicated region
      $region41: #{tpu_custom_call.1} parent=5 // pred_check
        %p335 = pneg %p334
      $region42: #{tpu_custom_call.1} parent=5 // pred_check_branch
        %337 = sbr.rel (%p335) target = $region44
      $region43: #{tpu_custom_call.1} parent=5 // pred_region
        %s338 = ssub.s32 %s15, 2
        // Predicated region
        $region45: #{tpu_custom_call.1} parent=43 // pred_check
          %p339 = pneg %p128
        $region46: #{tpu_custom_call.1} parent=43 // pred_check_branch
          %341 = sbr.rel (%p339) target = $region48
        $region47: #{tpu_custom_call.1} parent=43 // pred_region
          %s342 = sand.u32 %s113, 1
          %s343 = scalar_lea.sflag [#allocation4], %s342
          %s344 = sand.u32 %s113, 1
          %s345 = smul.addr %s344, 16
          %s346 = scalar_lea.vmem [#allocation5], %s345
          %347 = dma.done %s343, 256
        $region48: #{tpu_custom_call.1} parent=43 // pred_fallthru
          _
      $region44: #{tpu_custom_call.1} parent=5 // pred_fallthru
        _
    $region6: #{tpu_custom_call.1} parent=1 // loop_footer
      %s19 = sadd.s32 1, %s15
    $region7: #{tpu_custom_call.1} parent=1 // loop_footer_branch
      %14 = sbr.rel target = $region3
    $region8: #{tpu_custom_call.1} parent=1 // loop_exit
      _
    %348 = vsyncpa [#allocation3], 1
    %s349 = scalar_lea.sflag [#allocation3], 1
    %350 = vsyncpa %s349, 1
    %351 = vsyncpa [#allocation4], 1
    %s352 = scalar_lea.sflag [#allocation4], 1
    %353 = vsyncpa %s352, 1

</llo_original>
